<compile_context>
chip_gen: v7x
topology: tpu7x:2x2x1
jax: 0.10.0
libtpu: 0.0.40
codegen_flags: <defaults>
</compile_context>

<pallas_src>
import numpy as np
import jax
import jax.numpy as jnp
from jax.experimental import pallas as pl
from jax.experimental.pallas import tpu as pltpu


# ----------------------------------------------------------------------------
# Hierarchy (from the PyTorch module), flattened into per-lane lookup tables.
# ----------------------------------------------------------------------------
GROUP_TO_TECH = {0: [0], 1: [1], 2: [2, 3, 4], 3: [5, 6, 7], 4: [8, 9]}
TECH_TO_FINAL = {0: [0], 1: [1, 19], 2: [2, 3, 4],
                 3: [5, 6, 7, 8, 9, 10, 11, 12, 20, 21, 22, 24],
                 4: [13], 5: [17], 6: [15], 7: [18], 8: [16], 9: [14, 23]}

GROUP_SIZE = 5          # group_size + 1
TECH_SIZE = 10          # tech_size + 1
FINAL_TECH_SIZE = 25    # final_tech_size + 1
C_TOTAL = GROUP_SIZE + TECH_SIZE + FINAL_TECH_SIZE   # 40 fused logit columns
TECH_OFF = GROUP_SIZE                                # tech lanes start at 5
FIN_OFF = GROUP_SIZE + TECH_SIZE                     # final lanes start at 15


def _flat_maps():
    tech_group = [0] * TECH_SIZE
    for g, techs in GROUP_TO_TECH.items():
        for t in techs:
            tech_group[t] = g
    final_tech = [0] * FINAL_TECH_SIZE
    for t, fts in TECH_TO_FINAL.items():
        for f in fts:
            final_tech[f] = t
    return tuple(tech_group), tuple(final_tech)


TECH_GROUP, FINAL_TECH = _flat_maps()

# Per-lane lookup tables over the fused 40-wide logit vector:
#   MAPS_NP[0, lane] = group id of that tech lane,  -1 elsewhere
#   MAPS_NP[1, lane] = tech id of that final lane,  -1 elsewhere
_tg = np.full((C_TOTAL,), -1, np.int32)
for _j, _g in enumerate(TECH_GROUP):
    _tg[TECH_OFF + _j] = _g
_ft = np.full((C_TOTAL,), -1, np.int32)
for _j, _t in enumerate(FINAL_TECH):
    _ft[FIN_OFF + _j] = _t
MAPS_NP = np.stack([_tg, _ft]).astype(np.int32)      # (2, 40)


# ----------------------------------------------------------------------------
# Pallas kernel
# ----------------------------------------------------------------------------
def _first_argmax(vals, valid, iota):
    """First-occurrence argmax over the lane axis restricted to `valid` lanes.

    vals: (N, C_TOTAL) f32; valid: (1, C_TOTAL) bool; iota: (1, C_TOTAL) i32.
    Returns (N, 1) int32 lane indices.
    """
    v = jnp.where(valid, vals, jnp.float32(-jnp.inf))
    m = jnp.max(v, axis=-1, keepdims=True)
    hit = (v == m) & valid
    idx = jnp.where(hit, iota, jnp.int32(C_TOTAL))
    return jnp.min(idx, axis=-1, keepdims=True)


def _hier_kernel(x_ref, w_ref, b_ref, maps_ref, out_ref):
    # Fused 3-head linear on the MXU: bf16 inputs (cast here, not in the
    # wrapper), f32 accumulation.  (dropout = identity in eval mode)
    xb = x_ref[...].astype(jnp.bfloat16)
    logits = jnp.dot(xb, w_ref[...],
                     preferred_element_type=jnp.float32) + b_ref[...]   # (BN, 40)

    iota = jax.lax.broadcasted_iota(jnp.int32, (1, C_TOTAL), 1)
    is_grp = iota < TECH_OFF                              # lanes [0, 5)
    is_tech = (iota >= TECH_OFF) & (iota < FIN_OFF)       # lanes [5, 15)

    tg = maps_ref[0:1, :]                                 # (1, 40) resident table
    ft = maps_ref[1:2, :]                                 # (1, 40) resident table

    # group -> tech masking (disjoint partition => masked copy == scatter-add,
    # zero-fill exactly like the PyTorch zeros + += mask*output).
    group_pred = _first_argmax(logits, is_grp, iota)                 # (BN,1) in [0,5)
    tech_keep = tg == group_pred                                     # in-group tech lanes only
    tech_vals = jnp.where(tech_keep, logits, jnp.float32(0.0))

    # tech -> final_tech masking.
    tech_pred = _first_argmax(tech_vals, is_tech, iota) - TECH_OFF   # (BN,1) in [0,10)
    fin_keep = ft == tech_pred                                       # in-tech final lanes only

    keep = is_grp | tech_keep | fin_keep
    out_ref[...] = jnp.where(keep, logits, jnp.float32(0.0))


def _round_up(n, m):
    return (n + m - 1) // m * m


def _pick_block_n(n, h, max_block_rows, vmem_budget_bytes):
    """Largest row tile whose double-buffered VMEM footprint fits the budget."""
    per_row = 2 * h * 4 + 2 * C_TOTAL * 4          # f32 x tile + f32 out tile (x2 buffers)
    fixed = 2 * h * C_TOTAL * 2 + (1 << 16)        # resident bf16 weight + bias/maps slack
    avail = max(vmem_budget_bytes - fixed, 8 * per_row)
    block_n = min(max_block_rows, avail // per_row, _round_up(n, 8))
    return max(8, (block_n // 8) * 8)


def _run_kernel(x_flat, w_fused, b_fused, maps, *,
                max_block_rows=2048, vmem_budget_bytes=12 << 20):
    n, h = x_flat.shape
    block_n = _pick_block_n(n, h, max_block_rows, vmem_budget_bytes)
    grid = (pl.cdiv(n, block_n),)   # ragged last tile handled by Pallas; no pad/slice

    cost = pl.CostEstimate(
        flops=2 * n * h * C_TOTAL,
        bytes_accessed=n * h * 4 + h * C_TOTAL * 2 + n * C_TOTAL * 4 + 3 * C_TOTAL * 4,
        transcendentals=0)

    return pl.pallas_call(
        _hier_kernel,
        out_shape=jax.ShapeDtypeStruct((n, C_TOTAL), jnp.float32),
        grid=grid,
        in_specs=[
            pl.BlockSpec((block_n, h), lambda i: (i, 0)),    # x tile (f32, pipelined)
            pl.BlockSpec((h, C_TOTAL), lambda i: (0, 0)),    # fused bf16 weight (resident)
            pl.BlockSpec((1, C_TOTAL), lambda i: (0, 0)),    # fused f32 bias   (resident)
            pl.BlockSpec((2, C_TOTAL), lambda i: (0, 0)),    # hierarchy maps   (resident)
        ],
        out_specs=pl.BlockSpec((block_n, C_TOTAL), lambda i: (i, 0)),
        compiler_params=pltpu.CompilerParams(
            dimension_semantics=("parallel",)),
        cost_estimate=cost,
    )(x_flat, w_fused, b_fused, maps)


# ----------------------------------------------------------------------------
# Wrapper (glue: flatten, fuse params, nearest upsample, reshapes)
# ----------------------------------------------------------------------------
def _upsample_nearest_time(z, note_size):
    # z: (B, T, C) -> (B, note_size, C); matches nn.Upsample(size=note_size, mode='nearest')
    t = z.shape[1]
    idx = (jnp.arange(note_size) * t) // note_size
    return z[:, idx, :]


def hierarchical_output_layer(x, note_size, params, *, max_block_rows=2048):
    """x: (B, T, H) float32.  Returns the 4 tensors of the PyTorch forward."""
    b, t, h = x.shape
    # TODO(synk): training-mode dropout not implemented (eval-mode identity).
    w_fused = jnp.concatenate([params["wg"], params["wt"], params["wf"]],
                              axis=1).astype(jnp.bfloat16)             # (H, 40)
    b_fused = jnp.concatenate([params["bg"], params["bt"], params["bf"]],
                              axis=1).astype(jnp.float32)              # (1, 40)
    maps = jnp.asarray(MAPS_NP)                                        # (2, 40) i32
    x_flat = x.reshape(b * t, h)     # stays f32; bf16 cast happens inside the kernel

    fused = _run_kernel(x_flat, w_fused, b_fused, maps,
                        max_block_rows=max_block_rows)

    grp = fused[:, :TECH_OFF].reshape(b, t, GROUP_SIZE)
    tech = fused[:, TECH_OFF:FIN_OFF].reshape(b, t, TECH_SIZE)
    fin = fused[:, FIN_OFF:].reshape(b, t, FINAL_TECH_SIZE)
    frame_level_final = fin
    return (_upsample_nearest_time(grp, note_size),
            _upsample_nearest_time(tech, note_size),
            _upsample_nearest_time(fin, note_size),
            frame_level_final)


def init_params(key, input_size):
    """Deterministic synthetic params; weights stored as (in, out)."""
    ks = jax.random.split(key, 6)

    def lin(kw, kb, out):
        bound = 1.0 / jnp.sqrt(input_size)
        w = jax.random.uniform(kw, (input_size, out), jnp.float32, -bound, bound)
        bvec = jax.random.uniform(kb, (1, out), jnp.float32, -bound, bound)
        return w, bvec

    wg, bg = lin(ks[0], ks[1], GROUP_SIZE)
    wt, bt = lin(ks[2], ks[3], TECH_SIZE)
    wf, bf = lin(ks[4], ks[5], FINAL_TECH_SIZE)
    return {"wg": wg, "bg": bg, "wt": wt, "bt": bt, "wf": wf, "bf": bf}


# ----------------------------------------------------------------------------
# Pure-JAX reference (same bf16 matmul inputs, f32 accumulation)
# ----------------------------------------------------------------------------
def _reference(x, note_size, params):
    b, t, h = x.shape
    xb = x.reshape(b * t, h).astype(jnp.bfloat16)

    def head(w, bias):
        y = jnp.dot(xb, w.astype(jnp.bfloat16),
                    preferred_element_type=jnp.float32) + bias
        return y.reshape(b, t, -1)

    grp = head(params["wg"], params["bg"])
    tech_raw = head(params["wt"], params["bt"])
    fin_raw = head(params["wf"], params["bf"])

    tg = jnp.asarray(TECH_GROUP, jnp.int32)
    ft = jnp.asarray(FINAL_TECH, jnp.int32)
    gpred = jnp.argmax(grp, axis=-1)[..., None]
    tech = jnp.where(tg[None, None, :] == gpred, tech_raw, 0.0)
    tpred = jnp.argmax(tech, axis=-1)[..., None]
    fin = jnp.where(ft[None, None, :] == tpred, fin_raw, 0.0)

    return (_upsample_nearest_time(grp, note_size),
            _upsample_nearest_time(tech, note_size),
            _upsample_nearest_time(fin, note_size),
            fin)


if __name__ == "__main__":
    key = jax.random.PRNGKey(0)
    B, T, H = 2, 8, 32
    NOTE_SIZE = 12

    kx, kp = jax.random.split(key)
    x = jax.random.normal(kx, (B, T, H), jnp.float32)
    params = init_params(kp, H)

    outs = jax.block_until_ready(hierarchical_output_layer(x, NOTE_SIZE, params))
    refs = jax.block_until_ready(_reference(x, NOTE_SIZE, params))

    expected_shapes = [(B, NOTE_SIZE, GROUP_SIZE),
                       (B, NOTE_SIZE, TECH_SIZE),
                       (B, NOTE_SIZE, FINAL_TECH_SIZE),
                       (B, T, FINAL_TECH_SIZE)]
    for o, r, s in zip(outs, refs, expected_shapes):
        assert o.shape == s, (o.shape, s)
        assert jnp.allclose(o, r, atol=1e-3, rtol=1e-3), \
            float(jnp.max(jnp.abs(o - r)))
    print("KERNEL_OK")
</pallas_src>

<mosaic_0001>
module attributes {stable_mosaic.version = 11 : i64} {
  func.func @_hier_kernel(%arg0: i32, %arg1: memref<16x32xf32, #tpu.memory_space<vmem>>, %arg2: memref<32x40xbf16, #tpu.memory_space<vmem>>, %arg3: memref<1x40xf32, #tpu.memory_space<vmem>>, %arg4: memref<2x40xi32, #tpu.memory_space<vmem>>, %arg5: memref<16x40xf32, #tpu.memory_space<vmem>>) attributes {dimension_semantics = [#tpu.dimension_semantics<parallel>], iteration_bounds = array<i64: 1>, scalar_prefetch = 0 : i64, scratch_operands = 0 : i64, tpu.core_type = #tpu.core_type<tc>, window_params = [{transform_indices = @transform_0, window_bounds = array<i64: 16, 32>}, {pipeline_mode = #tpu.pipeline_mode<synchronous>, transform_indices = @transform_1, window_bounds = array<i64: 32, 40>}, {pipeline_mode = #tpu.pipeline_mode<synchronous>, transform_indices = @transform_2, window_bounds = array<i64: 1, 40>}, {pipeline_mode = #tpu.pipeline_mode<synchronous>, transform_indices = @transform_3, window_bounds = array<i64: 2, 40>}, {transform_indices = @transform_4, window_bounds = array<i64: 16, 40>}]} {
    %c0 = arith.constant 0 : index
    %c0_0 = arith.constant 0 : index
    %0 = vector.load %arg1[%c0, %c0_0] : memref<16x32xf32, #tpu.memory_space<vmem>>, vector<16x32xf32>
    %1 = arith.truncf %0 : vector<16x32xf32> to vector<16x32xbf16>
    %c0_1 = arith.constant 0 : index
    %c0_2 = arith.constant 0 : index
    %2 = vector.load %arg2[%c0_1, %c0_2] : memref<32x40xbf16, #tpu.memory_space<vmem>>, vector<32x40xbf16>
    %cst = arith.constant dense<0.000000e+00> : vector<16x40xf32>
    %3 = tpu.matmul %1, %2, %cst {dimension_numbers = #tpu.dot_dimension_numbers<[1], [0], [0], [1], [0, 0, 1, 1], [], []>} : vector<16x32xbf16>, vector<32x40xbf16>, vector<16x40xf32> -> vector<16x40xf32>
    %c0_3 = arith.constant 0 : index
    %c0_4 = arith.constant 0 : index
    %4 = vector.load %arg3[%c0_3, %c0_4] : memref<1x40xf32, #tpu.memory_space<vmem>>, vector<1x40xf32>
    %5 = vector.broadcast %4 : vector<1x40xf32> to vector<16x40xf32>
    %6 = arith.addf %3, %5 : vector<16x40xf32>
    %7 = tpu.iota {dimensions = array<i32: 1>} : vector<1x40xi32>
    %c5_i32 = arith.constant 5 : i32
    %8 = vector.broadcast %c5_i32 : i32 to vector<1x40xi32>
    %9 = arith.cmpi slt, %7, %8 : vector<1x40xi32>
    %c5_i32_5 = arith.constant 5 : i32
    %10 = vector.broadcast %c5_i32_5 : i32 to vector<1x40xi32>
    %11 = arith.cmpi sge, %7, %10 : vector<1x40xi32>
    %c15_i32 = arith.constant 15 : i32
    %12 = vector.broadcast %c15_i32 : i32 to vector<1x40xi32>
    %13 = arith.cmpi slt, %7, %12 : vector<1x40xi32>
    %14 = arith.andi %11, %13 : vector<1x40xi1>
    %c0_6 = arith.constant 0 : index
    %c0_7 = arith.constant 0 : index
    %15 = vector.load %arg4[%c0_6, %c0_7] : memref<2x40xi32, #tpu.memory_space<vmem>>, vector<1x40xi32>
    %c1 = arith.constant 1 : index
    %c0_8 = arith.constant 0 : index
    %16 = vector.load %arg4[%c1, %c0_8] : memref<2x40xi32, #tpu.memory_space<vmem>>, vector<1x40xi32>
    %cst_9 = arith.constant 0xFF800000 : f32
    %17 = vector.shape_cast %9 : vector<1x40xi1> to vector<1x40xi1>
    %18 = vector.broadcast %17 : vector<1x40xi1> to vector<16x40xi1>
    %19 = vector.broadcast %cst_9 : f32 to vector<16x40xf32>
    %20 = arith.select %18, %6, %19 : vector<16x40xi1>, vector<16x40xf32>
    %cst_10 = arith.constant dense<0xFF800000> : vector<16xf32>
    %21 = vector.multi_reduction <maximumf>, %20, %cst_10 [1] : vector<16x40xf32> to vector<16xf32>
    %22 = vector.shape_cast %21 : vector<16xf32> to vector<16x1xf32>
    %23 = vector.broadcast %22 : vector<16x1xf32> to vector<16x40xf32>
    %24 = arith.cmpf oeq, %20, %23 : vector<16x40xf32>
    %25 = vector.broadcast %9 : vector<1x40xi1> to vector<16x40xi1>
    %26 = arith.andi %24, %25 : vector<16x40xi1>
    %c40_i32 = arith.constant 40 : i32
    %27 = vector.shape_cast %7 : vector<1x40xi32> to vector<1x40xi32>
    %28 = vector.broadcast %27 : vector<1x40xi32> to vector<16x40xi32>
    %29 = vector.broadcast %c40_i32 : i32 to vector<16x40xi32>
    %30 = arith.select %26, %28, %29 : vector<16x40xi1>, vector<16x40xi32>
    %cst_11 = arith.constant dense<2147483647> : vector<16xi32>
    %31 = vector.multi_reduction <minsi>, %30, %cst_11 [1] : vector<16x40xi32> to vector<16xi32>
    %32 = vector.shape_cast %31 : vector<16xi32> to vector<16x1xi32>
    %33 = vector.broadcast %15 : vector<1x40xi32> to vector<16x40xi32>
    %34 = vector.broadcast %32 : vector<16x1xi32> to vector<16x40xi32>
    %35 = arith.cmpi eq, %33, %34 : vector<16x40xi32>
    %cst_12 = arith.constant 0.000000e+00 : f32
    %36 = vector.broadcast %cst_12 : f32 to vector<16x40xf32>
    %37 = arith.select %35, %6, %36 : vector<16x40xi1>, vector<16x40xf32>
    %cst_13 = arith.constant 0xFF800000 : f32
    %38 = vector.shape_cast %14 : vector<1x40xi1> to vector<1x40xi1>
    %39 = vector.broadcast %38 : vector<1x40xi1> to vector<16x40xi1>
    %40 = vector.broadcast %cst_13 : f32 to vector<16x40xf32>
    %41 = arith.select %39, %37, %40 : vector<16x40xi1>, vector<16x40xf32>
    %cst_14 = arith.constant dense<0xFF800000> : vector<16xf32>
    %42 = vector.multi_reduction <maximumf>, %41, %cst_14 [1] : vector<16x40xf32> to vector<16xf32>
    %43 = vector.shape_cast %42 : vector<16xf32> to vector<16x1xf32>
    %44 = vector.broadcast %43 : vector<16x1xf32> to vector<16x40xf32>
    %45 = arith.cmpf oeq, %41, %44 : vector<16x40xf32>
    %46 = vector.broadcast %14 : vector<1x40xi1> to vector<16x40xi1>
    %47 = arith.andi %45, %46 : vector<16x40xi1>
    %c40_i32_15 = arith.constant 40 : i32
    %48 = vector.shape_cast %7 : vector<1x40xi32> to vector<1x40xi32>
    %49 = vector.broadcast %48 : vector<1x40xi32> to vector<16x40xi32>
    %50 = vector.broadcast %c40_i32_15 : i32 to vector<16x40xi32>
    %51 = arith.select %47, %49, %50 : vector<16x40xi1>, vector<16x40xi32>
    %cst_16 = arith.constant dense<2147483647> : vector<16xi32>
    %52 = vector.multi_reduction <minsi>, %51, %cst_16 [1] : vector<16x40xi32> to vector<16xi32>
    %53 = vector.shape_cast %52 : vector<16xi32> to vector<16x1xi32>
    %c5_i32_17 = arith.constant 5 : i32
    %54 = vector.broadcast %c5_i32_17 : i32 to vector<16x1xi32>
    %55 = arith.subi %53, %54 : vector<16x1xi32>
    %56 = vector.broadcast %16 : vector<1x40xi32> to vector<16x40xi32>
    %57 = vector.broadcast %55 : vector<16x1xi32> to vector<16x40xi32>
    %58 = arith.cmpi eq, %56, %57 : vector<16x40xi32>
    %59 = vector.broadcast %9 : vector<1x40xi1> to vector<16x40xi1>
    %60 = arith.ori %59, %35 : vector<16x40xi1>
    %61 = arith.ori %60, %58 : vector<16x40xi1>
    %cst_18 = arith.constant 0.000000e+00 : f32
    %62 = vector.broadcast %cst_18 : f32 to vector<16x40xf32>
    %63 = arith.select %61, %6, %62 : vector<16x40xi1>, vector<16x40xf32>
    %c0_19 = arith.constant 0 : index
    %c0_20 = arith.constant 0 : index
    %64 = vector.load %arg5[%c0_19, %c0_20] : memref<16x40xf32, #tpu.memory_space<vmem>>, vector<16x40xf32>
    tpu.vector_store %arg5[%c0_19, %c0_20], %63 {strides = array<i32>} : memref<16x40xf32, #tpu.memory_space<vmem>>, vector<16x40xf32>,
    return
  }
  func.func @transform_0(%arg0: i32) -> (i32, i32) {
    %c0_i32 = arith.constant 0 : i32
    %c0_i32_0 = arith.constant 0 : i32
    return %arg0, %c0_i32 : i32, i32
  }
  func.func @transform_1(%arg0: i32) -> (i32, i32) {
    %c0_i32 = arith.constant 0 : i32
    %c0_i32_0 = arith.constant 0 : i32
    %c0_i32_1 = arith.constant 0 : i32
    return %c0_i32, %c0_i32_0 : i32, i32
  }
  func.func @transform_2(%arg0: i32) -> (i32, i32) {
    %c0_i32 = arith.constant 0 : i32
    %c0_i32_0 = arith.constant 0 : i32
    %c0_i32_1 = arith.constant 0 : i32
    return %c0_i32, %c0_i32_0 : i32, i32
  }
  func.func @transform_3(%arg0: i32) -> (i32, i32) {
    %c0_i32 = arith.constant 0 : i32
    %c0_i32_0 = arith.constant 0 : i32
    %c0_i32_1 = arith.constant 0 : i32
    return %c0_i32, %c0_i32_0 : i32, i32
  }
  func.func @transform_4(%arg0: i32) -> (i32, i32) {
    %c0_i32 = arith.constant 0 : i32
    %c0_i32_0 = arith.constant 0 : i32
    return %arg0, %c0_i32 : i32, i32
  }
}

</mosaic_0001>

<llo_original>
// kernel: tpu_custom_call.1
$region0: #{tpu_custom_call.1}
  #allocation0 [shape = 'u32[]', space=smem, size = 0x4, offset = 0x4, fixed_abs, tag = 'smem constant byte address 0x4 - core index']
  #allocation1 [shape = 'u32[144,128]{1,0:T(1,128)}', space=vmem, size = 0x12000, scoped, tag = 'internal scratch']
  %s0 = inlined_call_operand.hbm [shape: f32[16,32], index: 0, kind: input, shape index: {}]
  %s1 = inlined_call_operand.hbm [shape: bf16[32,40], index: 1, kind: input, shape index: {}]
  %s2 = inlined_call_operand.vmem [shape: f32[1,40], index: 2, kind: input, shape index: {}]
  %s3 = inlined_call_operand.vmem [shape: s32[2,40], index: 3, kind: input, shape index: {}]
  %s4 = inlined_call_operand.hbm [shape: f32[16,40], index: 4, kind: output, shape index: {}]
  %s5 = sld [smem:[#allocation0]]
  $region34: #{tpu_custom_call.1} parent=0
    _
  %s7 = ssub.s32 1, %s5
  %s8 = scalar_select 0, %s7, %s5
  $region1: #{tpu_custom_call.1} parent=0
    #allocation2 [shape = 'u8[8192]{0}', space=vmem, size = 0x2000, scoped, tag = 'input window, operand 0, single buffered']
    #allocation3 [shape = 's32[1]{0}', space=sflag, size = 0x4, scoped, tag = 'scoped memory for tpu_custom_call.1']
    #allocation4 [shape = 's32[1]{0}', space=sflag, size = 0x4, scoped, tag = 'scoped memory for tpu_custom_call.1']
    #allocation5 [shape = 'u8[8192]{0}', space=vmem, size = 0x2000, scoped, tag = 'input window, operand 1, single buffered']
    #allocation6 [shape = 's32[1]{0}', space=sflag, size = 0x4, scoped, tag = 'scoped memory for tpu_custom_call.1']
    #allocation7 [shape = 'u8[8192]{0}', space=vmem, size = 0x2000, scoped, tag = 'output window, operand 0, single buffered']
    %9 = vsyncpa [#allocation3], 0
    %10 = vsyncpa [#allocation6], 0
    %11 = vsyncpa [#allocation4], 0
    // Predicated region
    $region2: #{tpu_custom_call.1} parent=1 // pred_check
      _
    $region3: #{tpu_custom_call.1} parent=1 // pred_check_branch
      %13 = sbr.rel (0) target = $region5
    $region4: #{tpu_custom_call.1} parent=1 // pred_region
      %s15 = ssub.s32 256, 256
      %16 = vsyncadd [#allocation3], %s15
      %s17 = sshll.u32 [#allocation2], 4
      %s18 = int_to_ptr.vmem [resolvable:$true] %s17
      %23 = dma.hbm_to_vmem [thread:$0]  %s0, 256, %s18, [#allocation3], 128, 128, 8
    $region5: #{tpu_custom_call.1} parent=1 // pred_fallthru
      _
    // Predicated region
    $region6: #{tpu_custom_call.1} parent=1 // pred_check
      _
    $region7: #{tpu_custom_call.1} parent=1 // pred_check_branch
      %25 = sbr.rel (0) target = $region9
    $region8: #{tpu_custom_call.1} parent=1 // pred_region
      %s27 = ssub.s32 256, 256
      %28 = vsyncadd [#allocation6], %s27
      %s29 = sshll.u32 [#allocation5], 4
      %s30 = int_to_ptr.vmem [resolvable:$true] %s29
      %35 = dma.hbm_to_vmem [thread:$0]  %s1, 256, %s30, [#allocation6], 64, 64, 4
    $region9: #{tpu_custom_call.1} parent=1 // pred_fallthru
      _
    // Predicated region
    $region10: #{tpu_custom_call.1} parent=1 // pred_check
      _
    $region11: #{tpu_custom_call.1} parent=1 // pred_check_branch
      %37 = sbr.rel (0) target = $region13
    $region12: #{tpu_custom_call.1} parent=1 // pred_region
      _
    $region13: #{tpu_custom_call.1} parent=1 // pred_fallthru
      _
    // Predicated region
    $region14: #{tpu_custom_call.1} parent=1 // pred_check
      _
    $region15: #{tpu_custom_call.1} parent=1 // pred_check_branch
      %39 = sbr.rel (0) target = $region17
    $region16: #{tpu_custom_call.1} parent=1 // pred_region
      _
    $region17: #{tpu_custom_call.1} parent=1 // pred_fallthru
      _
    // Predicated region
    $region18: #{tpu_custom_call.1} parent=1 // pred_check
      _
    $region19: #{tpu_custom_call.1} parent=1 // pred_check_branch
      %41 = sbr.rel (0) target = $region21
    $region20: #{tpu_custom_call.1} parent=1 // pred_region
      %42 = dma.done [#allocation3], 256
    $region21: #{tpu_custom_call.1} parent=1 // pred_fallthru
      _
    // Predicated region
    $region22: #{tpu_custom_call.1} parent=1 // pred_check
      _
    $region23: #{tpu_custom_call.1} parent=1 // pred_check_branch
      %44 = sbr.rel (0) target = $region25
    $region24: #{tpu_custom_call.1} parent=1 // pred_region
      %45 = dma.done [#allocation6], 256
    $region25: #{tpu_custom_call.1} parent=1 // pred_fallthru
      _
    %v47 = vld [vmem:[#allocation2] sm:$0xff]
    %v48 = vld [vmem:[#allocation2 + $0x8] sm:$0xff]
    %v49 = vpack.c.bf16 %v48, %v47
    %v50 = vld [vmem:[#allocation5] sm:$0xf]
    %v51 = vld [vmem:[#allocation5 + $0x4] sm:$0xf]
    %v52 = vld [vmem:[#allocation5 + $0x8] sm:$0xf]
    %v53 = vld [vmem:[#allocation5 + $0xc] sm:$0xf]
    %v54 = vld [vmem:[%s2] sm:$0x1]
    %v56 = vlaneseq
    %v57 = vshrl.u32 %v56, 7
    %v58 = vsub.s32 0, %v57
    %v59 = vrot.slane %v54, %v58
    %v65 = vunpack.c.l.b16 %v50
    %v66 = vunpack.c.l.b16 %v51
    %v67 = vunpack.c.l.b16 %v52
    %v68 = vunpack.c.l.b16 %v53
    %v69 = vpack.c.b16 %v66, %v65
    %v70 = vpack.c.b16 %v68, %v67
    %vm73 = vcmask 261120
    %v75 = vsel %vm73, %v49, 0
    %77 = vmatprep.subr.bf16.mxu0 0
    %78 = vmatpush1.bf16.msra.mxu0 %v69
    %79 = vmatprep.subr.bf16.mxu0 0
    %80 = vmatpush1.bf16.msra.mxu0 %v70
    %81 = vmatprep.subr.bf16.mxu0 0
    %82 = vmatpush1.bf16.msra.mxu0 0
    %83 = vmatprep.subr.bf16.mxu0 0
    %84 = vmatpush1.bf16.msra.mxu0 0
    %85 = vmatprep.subr.bf16.mxu0 0
    %86 = vmatpush1.bf16.msra.mxu0 0
    %87 = vmatprep.subr.bf16.mxu0 0
    %88 = vmatpush1.bf16.msra.mxu0 0
    %89 = vmatprep.subr.bf16.mxu0 0
    %90 = vmatpush1.bf16.msra.mxu0 0
    %91 = vmatprep.subr.bf16.mxu0 0
    %92 = vmatpush1.bf16.msra.mxu0 0
    %93 = vmatprep.subr.bf16.mxu0 0
    %94 = vmatpush1.bf16.msra.mxu0 0
    %95 = vmatprep.subr.bf16.mxu0 0
    %96 = vmatpush1.bf16.msra.mxu0 0
    %97 = vmatprep.subr.bf16.mxu0 0
    %98 = vmatpush1.bf16.msra.mxu0 0
    %99 = vmatprep.subr.bf16.mxu0 0
    %100 = vmatpush1.bf16.msra.mxu0 0
    %101 = vmatprep.subr.bf16.mxu0 0
    %102 = vmatpush1.bf16.msra.mxu0 0
    %103 = vmatprep.subr.bf16.mxu0 0
    %104 = vmatpush1.bf16.msra.mxu0 0
    %105 = vmatprep.subr.bf16.mxu0 0
    %106 = vmatpush1.bf16.msra.mxu0 0
    %107 = vmatprep.subr.bf16.mxu0 0
    %108 = vmatpush1.bf16.msra.mxu0 0
    %109 = vmatprep.mubr.bf16.mxu0 0
    %110 = vmatmul.mubr.bf16.gmra.mrb[0].mxu0 %v75
    %v111 = vpop.f32.mrb[0].mxu0
    %v112 = vadd.f32 %v59, %v111
    %v113 = vpop.f32.mrb[0].mxu0
    %v114 = vpop.f32.mrb[0].mxu0
    %v115 = vadd.f32 %v59, %v114
    %v116 = vpop.f32.mrb[0].mxu0
    %117 = vdwg.mxu0
    %v118 = vlaneseq
    %v119 = vand.u32 %v118, 127
    %vm120 = vcmp.lt.s32.totalorder %v119, 5
    %vm121 = vcmp.ge.s32.totalorder %v119, 5
    %vm122 = vcmp.lt.s32.totalorder %v119, 15
    %vm123 = vmand %vm121, %vm122
    %v124 = vld [vmem:[%s3] sm:$0x1]
    %v125 = vld [vmem:[%s3 + $0x1] sm:$0x1]
    %v126 = vsel %vm120, 1, 0
    %vm127 = vcmp.eq.s32.totalorder %v126, 1
    %v128 = vsel %vm127, %v112, -inf
    %v129 = vsel %vm127, %v115, -inf
    %vm130 = vcmask 326656
    %v131 = vsel %vm130, %v128, -inf
    %132 = vmax.xlane.f32.xlu0 %v131
    %v133 = vpop.xlane.xlu0 %132
    %v134 = vsel %vm130, %v129, -inf
    %135 = vmax.xlane.f32.xlu0 %v134
    %v136 = vpop.xlane.xlu0 %135
    %vm137 = vcmp.eq.f32.partialorder %v128, %v133
    %vm138 = vcmp.eq.f32.partialorder %v129, %v136
    %vm139 = vmand %vm137, %vm127
    %vm140 = vmand %vm138, %vm127
    %v141 = vsel %vm139, %v119, 40
    %v142 = vsel %vm140, %v119, 40
    %v143 = vsel %vm130, %v141, 2147483647
    %v144 = vand.u32 %v143, 65535
    %v145 = vshra.s32 %v143, 16
    %v146 = vcvt.s32.f32 %v144
    %v147 = vcvt.s32.f32 %v145
    %148 = vmin.xlane.f32.xlu0 %v147
    %v149 = vpop.xlane.xlu0 %148
    %vm150 = vcmp.eq.f32.partialorder %v147, %v149
    %v151 = vsel %vm150, %v146, inf
    %152 = vmin.xlane.f32.xlu0 %v151
    %v153 = vpop.xlane.xlu0 %152
    %v154 = vcvt.f32.s32 %v153
    %v155 = vcvt.f32.s32 %v149
    %v156 = vshll.u32 %v155, 16
    %v157 = vadd.s32 %v156, %v154
    %v158 = vsel %vm130, %v142, 2147483647
    %v159 = vand.u32 %v158, 65535
    %v160 = vshra.s32 %v158, 16
    %v161 = vcvt.s32.f32 %v159
    %v162 = vcvt.s32.f32 %v160
    %163 = vmin.xlane.f32.xlu0 %v162
    %v164 = vpop.xlane.xlu0 %163
    %vm165 = vcmp.eq.f32.partialorder %v162, %v164
    %v166 = vsel %vm165, %v161, inf
    %167 = vmin.xlane.f32.xlu0 %v166
    %v168 = vpop.xlane.xlu0 %167
    %v169 = vcvt.f32.s32 %v168
    %v170 = vcvt.f32.s32 %v164
    %v171 = vshll.u32 %v170, 16
    %v172 = vadd.s32 %v171, %v169
    %v173 = vlaneseq
    %v174 = vshrl.u32 %v173, 7
    %v175 = vsub.s32 0, %v174
    %v176 = vrot.slane %v124, %v175
    %vm177 = vcmp.eq.s32.totalorder %v176, %v157
    %vm178 = vcmp.eq.s32.totalorder %v176, %v172
    %v179 = vsel %vm177, %v112, 0.0
    %v180 = vsel %vm178, %v115, 0.0
    %v181 = vsel %vm123, 1, 0
    %vm182 = vcmp.eq.s32.totalorder %v181, 1
    %v183 = vsel %vm182, %v179, -inf
    %v184 = vsel %vm182, %v180, -inf
    %v185 = vsel %vm130, %v183, -inf
    %186 = vmax.xlane.f32.xlu0 %v185
    %v187 = vpop.xlane.xlu0 %186
    %v188 = vsel %vm130, %v184, -inf
    %189 = vmax.xlane.f32.xlu0 %v188
    %v190 = vpop.xlane.xlu0 %189
    %vm191 = vcmp.eq.f32.partialorder %v183, %v187
    %vm192 = vcmp.eq.f32.partialorder %v184, %v190
    %vm193 = vmand %vm191, %vm182
    %vm194 = vmand %vm192, %vm182
    %v195 = vsel %vm193, %v119, 40
    %v196 = vsel %vm194, %v119, 40
    %v197 = vsel %vm130, %v195, 2147483647
    %v198 = vand.u32 %v197, 65535
    %v199 = vshra.s32 %v197, 16
    %v200 = vcvt.s32.f32 %v198
    %v201 = vcvt.s32.f32 %v199
    %202 = vmin.xlane.f32.xlu0 %v201
    %v203 = vpop.xlane.xlu0 %202
    %vm204 = vcmp.eq.f32.partialorder %v201, %v203
    %v205 = vsel %vm204, %v200, inf
    %206 = vmin.xlane.f32.xlu0 %v205
    %v207 = vpop.xlane.xlu0 %206
    %v208 = vcvt.f32.s32 %v207
    %v209 = vcvt.f32.s32 %v203
    %v210 = vshll.u32 %v209, 16
    %v211 = vadd.s32 %v210, %v208
    %v212 = vsel %vm130, %v196, 2147483647
    %v213 = vand.u32 %v212, 65535
    %v214 = vshra.s32 %v212, 16
    %v215 = vcvt.s32.f32 %v213
    %v216 = vcvt.s32.f32 %v214
    %217 = vmin.xlane.f32.xlu0 %v216
    %v218 = vpop.xlane.xlu0 %217
    %vm219 = vcmp.eq.f32.partialorder %v216, %v218
    %v220 = vsel %vm219, %v215, inf
    %221 = vmin.xlane.f32.xlu0 %v220
    %v222 = vpop.xlane.xlu0 %221
    %v223 = vcvt.f32.s32 %v222
    %v224 = vcvt.f32.s32 %v218
    %v225 = vshll.u32 %v224, 16
    %v226 = vadd.s32 %v225, %v223
    %v227 = vsub.s32 %v211, 5
    %v228 = vsub.s32 %v226, 5
    %v229 = vlaneseq
    %v230 = vshrl.u32 %v229, 7
    %v231 = vsub.s32 0, %v230
    %v232 = vrot.slane %v125, %v231
    %vm233 = vcmp.eq.s32.totalorder %v232, %v227
    %vm234 = vcmp.eq.s32.totalorder %v232, %v228
    %vm235 = vmor %vm127, %vm177
    %vm236 = vmor %vm127, %vm178
    %vm237 = vmor %vm235, %vm233
    %vm238 = vmor %vm236, %vm234
    %v239 = vsel %vm237, %v112, 0.0
    %v240 = vsel %vm238, %v115, 0.0
    %241 = vst.msk [vmem:[#allocation7] sm:$0xff] %vm130, %v239
    %242 = vst.msk [vmem:[#allocation7 + $0x8] sm:$0xff] %vm130, %v240
    // Predicated region
    $region26: #{tpu_custom_call.1} parent=1 // pred_check
      _
    $region27: #{tpu_custom_call.1} parent=1 // pred_check_branch
      %244 = sbr.rel (0) target = $region29
    $region28: #{tpu_custom_call.1} parent=1 // pred_region
      %s246 = ssub.s32 256, 256
      %247 = vsyncadd [#allocation4], %s246
      %s248 = sshll.u32 [#allocation7], 4
      %s249 = int_to_ptr.vmem [resolvable:$true] %s248
      %254 = dma.vmem_to_hbm [thread:$0]  %s249, 256, %s4, [#allocation4], 128, 128, 8
    $region29: #{tpu_custom_call.1} parent=1 // pred_fallthru
      _
    // Predicated region
    $region30: #{tpu_custom_call.1} parent=1 // pred_check
      _
    $region31: #{tpu_custom_call.1} parent=1 // pred_check_branch
      %256 = sbr.rel (0) target = $region33
    $region32: #{tpu_custom_call.1} parent=1 // pred_region
      %257 = dma.done [#allocation4], 256
    $region33: #{tpu_custom_call.1} parent=1 // pred_fallthru
      _
    %258 = vsyncpa [#allocation3], 1
    %259 = vsyncpa [#allocation6], 1
    %260 = vsyncpa [#allocation4], 1

</llo_original>
